<compile_context>
chip_gen: v5e
topology: v5e:2x2
jax: 0.10.0
libtpu: 0.0.40
codegen_flags: <defaults>
</compile_context>

<pallas_src>
import jax
import jax.numpy as jnp
from jax.experimental import pallas as pl
from jax.experimental.pallas import tpu as pltpu

_SUBLANE = 8


def _round_up(n: int, m: int) -> int:
    return ((n + m - 1) // m) * m


# --------------------------------------------------------------------------- #
# Kernel
# --------------------------------------------------------------------------- #
def _autoencoder_kernel(
    x_ref,            # (TB, D)
    w1_ref, b1_ref,   # (D, H), (1, H)   encoder layer 1
    w2_ref, b2_ref,   # (H, H), (1, H)   encoder layer 2
    w3_ref, b3_ref,   # (H, H), (1, H)   decoder layer 1
    w4_ref, b4_ref,   # (H, D), (1, D)   decoder layer 2
    enc_ref,          # (TB, H)  output: encoded
    dec_ref,          # (TB, D)  output: decoded
):
    wdt = w1_ref.dtype                      # MXU compute dtype (bf16 or f32)
    x = x_ref[...].astype(wdt)

    # ---- encoder ----
    h1 = jnp.dot(x, w1_ref[...], preferred_element_type=jnp.float32) + b1_ref[...]
    h1 = jnp.maximum(h1, 0.0)                                          # ReLU (f32)
    h2 = jnp.dot(h1.astype(wdt), w2_ref[...],
                 preferred_element_type=jnp.float32) + b2_ref[...]
    encoded = jnp.maximum(h2, 0.0)                                     # ReLU (f32)
    enc_ref[...] = encoded.astype(enc_ref.dtype)

    # ---- decoder ----
    h3 = jnp.dot(encoded.astype(wdt), w3_ref[...],
                 preferred_element_type=jnp.float32) + b3_ref[...]
    h3 = jnp.maximum(h3, 0.0)                                          # ReLU (f32)
    decoded = jnp.dot(h3.astype(wdt), w4_ref[...],
                      preferred_element_type=jnp.float32) + b4_ref[...]
    dec_ref[...] = decoded.astype(dec_ref.dtype)


# --------------------------------------------------------------------------- #
# Per-generation sizing helpers
# --------------------------------------------------------------------------- #
def _vmem_budget_bytes() -> int:
    """Per-core VMEM budget, clamped from hardware info when available."""
    try:
        cap = int(pltpu.get_tpu_info().vmem_capacity_bytes)
    except Exception:
        cap = 64 << 20                      # conservative: v7x per-TC VMEM
    return max(16 << 20, min(int(0.70 * cap), 112 << 20))


def _batch_dim_semantics():
    """CORE_PARALLEL on v7x (2 TensorCores/chip), plain 'parallel' elsewhere."""
    try:
        kind = jax.devices()[0].device_kind.lower()
    except Exception:
        kind = ""
    if "v7" in kind and hasattr(pltpu, "CORE_PARALLEL"):
        return (pltpu.CORE_PARALLEL,)
    return ("parallel",)


def _vmem_estimate(tb, d, h, x_bytes, w_bytes_total, out_bytes, compute_bytes):
    # Double-buffered batch tiles (x in, encoded/decoded out).
    io = 2 * tb * (d * x_bytes + h * out_bytes + d * out_bytes)
    # f32 intermediates (h1, encoded, h3, decoded) + compute-dtype cast copies.
    tmp = tb * (3 * h * 4 + d * 4 + 3 * h * compute_bytes + d * compute_bytes)
    return io + w_bytes_total + tmp + (2 << 20)      # +headroom


def _derive_batch_tile(batch, block_batch, fits):
    """Tile size ~ round_up(batch / n_tiles, 8); shrink until it fits VMEM."""
    num_tiles = max(1, -(-batch // block_batch))
    tb = _round_up(-(-batch // num_tiles), _SUBLANE)
    while tb > _SUBLANE and not fits(tb):
        tb = max(_SUBLANE, _round_up(tb // 2, _SUBLANE))
    return tb


# --------------------------------------------------------------------------- #
# Wrapper
# --------------------------------------------------------------------------- #
def knowledge_discovery_forward(x, params, *, block_batch: int = 1024,
                                out_dtype=jnp.float32):
    """Autoencoder forward.  Returns (encoded, decoded).

    x      : (batch, input_dim)  f32 or bf16
    params : (w1, b1, w2, b2, w3, b3, w4, b4); weights stored (in, out)
             (f32 or bf16), biases stored (1, out) f32.
    """
    w1, b1, w2, b2, w3, b3, w4, b4 = params
    batch, input_dim = x.shape
    hidden_dim = w1.shape[1]

    x_bytes = jnp.dtype(x.dtype).itemsize
    out_bytes = jnp.dtype(out_dtype).itemsize
    compute_bytes = jnp.dtype(w1.dtype).itemsize
    w_bytes_total = sum(int(a.size) * jnp.dtype(a.dtype).itemsize for a in params)

    budget = _vmem_budget_bytes()
    fits = lambda tb: _vmem_estimate(tb, input_dim, hidden_dim, x_bytes,
                                     w_bytes_total, out_bytes,
                                     compute_bytes) <= budget
    tb = _derive_batch_tile(batch, block_batch, fits)
    grid = (pl.cdiv(batch, tb),)            # partial last tile handled by Pallas

    flops = 2 * batch * (input_dim * hidden_dim
                         + 2 * hidden_dim * hidden_dim
                         + hidden_dim * input_dim)
    bytes_accessed = (batch * input_dim * x_bytes
                      + w_bytes_total
                      + batch * hidden_dim * out_bytes
                      + batch * input_dim * out_bytes)

    def _run(single_buffer_weights: bool):
        if single_buffer_weights and hasattr(pl, "Buffered"):
            def resident_spec(shape):
                return pl.BlockSpec(shape, lambda i: (0, 0),
                                    pipeline_mode=pl.Buffered(1))
        else:
            def resident_spec(shape):
                return pl.BlockSpec(shape, lambda i: (0, 0))

        in_specs = [pl.BlockSpec((tb, input_dim), lambda i: (i, 0))]
        in_specs += [resident_spec(p.shape) for p in params]
        out_specs = (
            pl.BlockSpec((tb, hidden_dim), lambda i: (i, 0)),   # encoded tile
            pl.BlockSpec((tb, input_dim), lambda i: (i, 0)),    # decoded tile
        )
        out_shapes = (
            jax.ShapeDtypeStruct((batch, hidden_dim), out_dtype),
            jax.ShapeDtypeStruct((batch, input_dim), out_dtype),
        )
        return pl.pallas_call(
            _autoencoder_kernel,
            out_shape=out_shapes,
            grid=grid,
            in_specs=in_specs,
            out_specs=out_specs,
            compiler_params=pltpu.CompilerParams(
                dimension_semantics=_batch_dim_semantics(),
                vmem_limit_bytes=int(budget),
            ),
            cost_estimate=pl.CostEstimate(flops=int(flops),
                                          transcendentals=0,
                                          bytes_accessed=int(bytes_accessed)),
        )(x, *params)

    try:
        encoded, decoded = _run(True)       # single-buffered resident weights
    except Exception:
        encoded, decoded = _run(False)      # fallback: default double-buffering
    return encoded, decoded


def init_params(key, input_dim, hidden_dim, param_dtype=jnp.bfloat16):
    """torch.nn.Linear-style init: U(-1/sqrt(fan_in), 1/sqrt(fan_in)).

    Weights are produced directly in (in_features, out_features) layout and in
    `param_dtype` (bf16 recommended: halves weight VMEM residency and DMA;
    accumulation is always f32 inside the kernel).  Biases are (1, out) f32.
    When porting PyTorch weights, transpose (out, in) -> (in, out) once at
    load time -- nothing is padded or cast per forward call.
    """
    def linear(k, fan_in, fan_out):
        kw, kb = jax.random.split(k)
        bound = 1.0 / jnp.sqrt(float(fan_in))
        w = jax.random.uniform(kw, (fan_in, fan_out), jnp.float32, -bound, bound)
        b = jax.random.uniform(kb, (1, fan_out), jnp.float32, -bound, bound)
        return w.astype(param_dtype), b.astype(jnp.float32)

    k1, k2, k3, k4 = jax.random.split(key, 4)
    w1, b1 = linear(k1, input_dim, hidden_dim)   # encoder[0]
    w2, b2 = linear(k2, hidden_dim, hidden_dim)  # encoder[2]
    w3, b3 = linear(k3, hidden_dim, hidden_dim)  # decoder[0]
    w4, b4 = linear(k4, hidden_dim, input_dim)   # decoder[2]
    return (w1, b1, w2, b2, w3, b3, w4, b4)


if __name__ == "__main__":
    batch = 8
    input_dim = 32
    hidden_dim = 64   # module default is 256; small shapes for the demo

    key = jax.random.PRNGKey(0)
    k_x, k_p = jax.random.split(key)
    x = jax.random.normal(k_x, (batch, input_dim), jnp.float32)
    params = init_params(k_p, input_dim, hidden_dim, param_dtype=jnp.bfloat16)

    encoded, decoded = knowledge_discovery_forward(x, params)
    jax.block_until_ready((encoded, decoded))

    # Reference in plain JAX: same math as the PyTorch forward, with the same
    # bf16 weight/activation casts and f32 accumulation as the kernel.
    w1, b1, w2, b2, w3, b3, w4, b4 = params
    cd = w1.dtype
    f32 = jnp.float32
    h = jnp.maximum(jnp.dot(x.astype(cd), w1, preferred_element_type=f32) + b1, 0.0)
    enc_ref = jnp.maximum(jnp.dot(h.astype(cd), w2, preferred_element_type=f32) + b2, 0.0)
    h = jnp.maximum(jnp.dot(enc_ref.astype(cd), w3, preferred_element_type=f32) + b3, 0.0)
    dec_ref = jnp.dot(h.astype(cd), w4, preferred_element_type=f32) + b4

    assert encoded.shape == (batch, hidden_dim)
    assert decoded.shape == (batch, input_dim)
    assert bool(jnp.all(jnp.isfinite(encoded))) and bool(jnp.all(jnp.isfinite(decoded)))
    assert jnp.allclose(encoded, enc_ref, atol=2e-2, rtol=2e-2)
    assert jnp.allclose(decoded, dec_ref, atol=2e-2, rtol=2e-2)

    print("KERNEL_OK")
</pallas_src>

<mosaic_0001>
module attributes {stable_mosaic.version = 11 : i64} {
  func.func @_autoencoder_kernel(%arg0: i32, %arg1: memref<8x32xf32, #tpu.memory_space<vmem>>, %arg2: memref<32x64xbf16, #tpu.memory_space<vmem>>, %arg3: memref<1x64xf32, #tpu.memory_space<vmem>>, %arg4: memref<64x64xbf16, #tpu.memory_space<vmem>>, %arg5: memref<1x64xf32, #tpu.memory_space<vmem>>, %arg6: memref<64x64xbf16, #tpu.memory_space<vmem>>, %arg7: memref<1x64xf32, #tpu.memory_space<vmem>>, %arg8: memref<64x32xbf16, #tpu.memory_space<vmem>>, %arg9: memref<1x32xf32, #tpu.memory_space<vmem>>, %arg10: memref<8x64xf32, #tpu.memory_space<vmem>>, %arg11: memref<8x32xf32, #tpu.memory_space<vmem>>) attributes {dimension_semantics = [#tpu.dimension_semantics<parallel>], iteration_bounds = array<i64: 1>, scalar_prefetch = 0 : i64, scratch_operands = 0 : i64, tpu.core_type = #tpu.core_type<tc>, window_params = [{transform_indices = @transform_0, window_bounds = array<i64: 8, 32>}, {pipeline_mode = #tpu.pipeline_mode<synchronous>, transform_indices = @transform_1, window_bounds = array<i64: 32, 64>}, {pipeline_mode = #tpu.pipeline_mode<synchronous>, transform_indices = @transform_2, window_bounds = array<i64: 1, 64>}, {pipeline_mode = #tpu.pipeline_mode<synchronous>, transform_indices = @transform_3, window_bounds = array<i64: 64, 64>}, {pipeline_mode = #tpu.pipeline_mode<synchronous>, transform_indices = @transform_4, window_bounds = array<i64: 1, 64>}, {pipeline_mode = #tpu.pipeline_mode<synchronous>, transform_indices = @transform_5, window_bounds = array<i64: 64, 64>}, {pipeline_mode = #tpu.pipeline_mode<synchronous>, transform_indices = @transform_6, window_bounds = array<i64: 1, 64>}, {pipeline_mode = #tpu.pipeline_mode<synchronous>, transform_indices = @transform_7, window_bounds = array<i64: 64, 32>}, {pipeline_mode = #tpu.pipeline_mode<synchronous>, transform_indices = @transform_8, window_bounds = array<i64: 1, 32>}, {transform_indices = @transform_9, window_bounds = array<i64: 8, 64>}, {transform_indices = @transform_10, window_bounds = array<i64: 8, 32>}]} {
    %c0 = arith.constant 0 : index
    %c0_0 = arith.constant 0 : index
    %0 = vector.load %arg1[%c0, %c0_0] : memref<8x32xf32, #tpu.memory_space<vmem>>, vector<8x32xf32>
    %1 = arith.truncf %0 : vector<8x32xf32> to vector<8x32xbf16>
    %c0_1 = arith.constant 0 : index
    %c0_2 = arith.constant 0 : index
    %2 = vector.load %arg2[%c0_1, %c0_2] : memref<32x64xbf16, #tpu.memory_space<vmem>>, vector<32x64xbf16>
    %cst = arith.constant dense<0.000000e+00> : vector<8x64xf32>
    %3 = tpu.matmul %1, %2, %cst {dimension_numbers = #tpu.dot_dimension_numbers<[1], [0], [0], [1], [0, 0, 1, 1], [], []>} : vector<8x32xbf16>, vector<32x64xbf16>, vector<8x64xf32> -> vector<8x64xf32>
    %c0_3 = arith.constant 0 : index
    %c0_4 = arith.constant 0 : index
    %4 = vector.load %arg3[%c0_3, %c0_4] : memref<1x64xf32, #tpu.memory_space<vmem>>, vector<1x64xf32>
    %5 = vector.broadcast %4 : vector<1x64xf32> to vector<8x64xf32>
    %6 = arith.addf %3, %5 : vector<8x64xf32>
    %cst_5 = arith.constant 0.000000e+00 : f32
    %7 = vector.broadcast %cst_5 : f32 to vector<8x64xf32>
    %8 = arith.maximumf %6, %7 : vector<8x64xf32>
    %9 = arith.truncf %8 : vector<8x64xf32> to vector<8x64xbf16>
    %c0_6 = arith.constant 0 : index
    %c0_7 = arith.constant 0 : index
    %10 = vector.load %arg4[%c0_6, %c0_7] : memref<64x64xbf16, #tpu.memory_space<vmem>>, vector<64x64xbf16>
    %cst_8 = arith.constant dense<0.000000e+00> : vector<8x64xf32>
    %11 = tpu.matmul %9, %10, %cst_8 {dimension_numbers = #tpu.dot_dimension_numbers<[1], [0], [0], [1], [0, 0, 1, 1], [], []>} : vector<8x64xbf16>, vector<64x64xbf16>, vector<8x64xf32> -> vector<8x64xf32>
    %c0_9 = arith.constant 0 : index
    %c0_10 = arith.constant 0 : index
    %12 = vector.load %arg5[%c0_9, %c0_10] : memref<1x64xf32, #tpu.memory_space<vmem>>, vector<1x64xf32>
    %13 = vector.broadcast %12 : vector<1x64xf32> to vector<8x64xf32>
    %14 = arith.addf %11, %13 : vector<8x64xf32>
    %cst_11 = arith.constant 0.000000e+00 : f32
    %15 = vector.broadcast %cst_11 : f32 to vector<8x64xf32>
    %16 = arith.maximumf %14, %15 : vector<8x64xf32>
    %c0_12 = arith.constant 0 : index
    %c0_13 = arith.constant 0 : index
    %17 = vector.load %arg10[%c0_12, %c0_13] : memref<8x64xf32, #tpu.memory_space<vmem>>, vector<8x64xf32>
    tpu.vector_store %arg10[%c0_12, %c0_13], %16 {strides = array<i32>} : memref<8x64xf32, #tpu.memory_space<vmem>>, vector<8x64xf32>,
    %18 = arith.truncf %16 : vector<8x64xf32> to vector<8x64xbf16>
    %c0_14 = arith.constant 0 : index
    %c0_15 = arith.constant 0 : index
    %19 = vector.load %arg6[%c0_14, %c0_15] : memref<64x64xbf16, #tpu.memory_space<vmem>>, vector<64x64xbf16>
    %cst_16 = arith.constant dense<0.000000e+00> : vector<8x64xf32>
    %20 = tpu.matmul %18, %19, %cst_16 {dimension_numbers = #tpu.dot_dimension_numbers<[1], [0], [0], [1], [0, 0, 1, 1], [], []>} : vector<8x64xbf16>, vector<64x64xbf16>, vector<8x64xf32> -> vector<8x64xf32>
    %c0_17 = arith.constant 0 : index
    %c0_18 = arith.constant 0 : index
    %21 = vector.load %arg7[%c0_17, %c0_18] : memref<1x64xf32, #tpu.memory_space<vmem>>, vector<1x64xf32>
    %22 = vector.broadcast %21 : vector<1x64xf32> to vector<8x64xf32>
    %23 = arith.addf %20, %22 : vector<8x64xf32>
    %cst_19 = arith.constant 0.000000e+00 : f32
    %24 = vector.broadcast %cst_19 : f32 to vector<8x64xf32>
    %25 = arith.maximumf %23, %24 : vector<8x64xf32>
    %26 = arith.truncf %25 : vector<8x64xf32> to vector<8x64xbf16>
    %c0_20 = arith.constant 0 : index
    %c0_21 = arith.constant 0 : index
    %27 = vector.load %arg8[%c0_20, %c0_21] : memref<64x32xbf16, #tpu.memory_space<vmem>>, vector<64x32xbf16>
    %cst_22 = arith.constant dense<0.000000e+00> : vector<8x32xf32>
    %28 = tpu.matmul %26, %27, %cst_22 {dimension_numbers = #tpu.dot_dimension_numbers<[1], [0], [0], [1], [0, 0, 1, 1], [], []>} : vector<8x64xbf16>, vector<64x32xbf16>, vector<8x32xf32> -> vector<8x32xf32>
    %c0_23 = arith.constant 0 : index
    %c0_24 = arith.constant 0 : index
    %29 = vector.load %arg9[%c0_23, %c0_24] : memref<1x32xf32, #tpu.memory_space<vmem>>, vector<1x32xf32>
    %30 = vector.broadcast %29 : vector<1x32xf32> to vector<8x32xf32>
    %31 = arith.addf %28, %30 : vector<8x32xf32>
    %c0_25 = arith.constant 0 : index
    %c0_26 = arith.constant 0 : index
    %32 = vector.load %arg11[%c0_25, %c0_26] : memref<8x32xf32, #tpu.memory_space<vmem>>, vector<8x32xf32>
    tpu.vector_store %arg11[%c0_25, %c0_26], %31 {strides = array<i32>} : memref<8x32xf32, #tpu.memory_space<vmem>>, vector<8x32xf32>,
    return
  }
  func.func @transform_0(%arg0: i32) -> (i32, i32) {
    %c0_i32 = arith.constant 0 : i32
    %c0_i32_0 = arith.constant 0 : i32
    return %arg0, %c0_i32 : i32, i32
  }
  func.func @transform_1(%arg0: i32) -> (i32, i32) {
    %c0_i32 = arith.constant 0 : i32
    %c0_i32_0 = arith.constant 0 : i32
    %c0_i32_1 = arith.constant 0 : i32
    return %c0_i32, %c0_i32_0 : i32, i32
  }
  func.func @transform_2(%arg0: i32) -> (i32, i32) {
    %c0_i32 = arith.constant 0 : i32
    %c0_i32_0 = arith.constant 0 : i32
    %c0_i32_1 = arith.constant 0 : i32
    return %c0_i32, %c0_i32_0 : i32, i32
  }
  func.func @transform_3(%arg0: i32) -> (i32, i32) {
    %c0_i32 = arith.constant 0 : i32
    %c0_i32_0 = arith.constant 0 : i32
    %c0_i32_1 = arith.constant 0 : i32
    return %c0_i32, %c0_i32_0 : i32, i32
  }
  func.func @transform_4(%arg0: i32) -> (i32, i32) {
    %c0_i32 = arith.constant 0 : i32
    %c0_i32_0 = arith.constant 0 : i32
    %c0_i32_1 = arith.constant 0 : i32
    return %c0_i32, %c0_i32_0 : i32, i32
  }
  func.func @transform_5(%arg0: i32) -> (i32, i32) {
    %c0_i32 = arith.constant 0 : i32
    %c0_i32_0 = arith.constant 0 : i32
    %c0_i32_1 = arith.constant 0 : i32
    return %c0_i32, %c0_i32_0 : i32, i32
  }
  func.func @transform_6(%arg0: i32) -> (i32, i32) {
    %c0_i32 = arith.constant 0 : i32
    %c0_i32_0 = arith.constant 0 : i32
    %c0_i32_1 = arith.constant 0 : i32
    return %c0_i32, %c0_i32_0 : i32, i32
  }
  func.func @transform_7(%arg0: i32) -> (i32, i32) {
    %c0_i32 = arith.constant 0 : i32
    %c0_i32_0 = arith.constant 0 : i32
    %c0_i32_1 = arith.constant 0 : i32
    return %c0_i32, %c0_i32_0 : i32, i32
  }
  func.func @transform_8(%arg0: i32) -> (i32, i32) {
    %c0_i32 = arith.constant 0 : i32
    %c0_i32_0 = arith.constant 0 : i32
    %c0_i32_1 = arith.constant 0 : i32
    return %c0_i32, %c0_i32_0 : i32, i32
  }
  func.func @transform_9(%arg0: i32) -> (i32, i32) {
    %c0_i32 = arith.constant 0 : i32
    %c0_i32_0 = arith.constant 0 : i32
    return %arg0, %c0_i32 : i32, i32
  }
  func.func @transform_10(%arg0: i32) -> (i32, i32) {
    %c0_i32 = arith.constant 0 : i32
    %c0_i32_0 = arith.constant 0 : i32
    return %arg0, %c0_i32 : i32, i32
  }
}

module attributes {stable_mosaic.version = 11 : i64} {
  func.func @_autoencoder_kernel(%arg0: i32, %arg1: memref<8x32xf32, #tpu.memory_space<vmem>>, %arg2: memref<32x64xbf16, #tpu.memory_space<vmem>>, %arg3: memref<1x64xf32, #tpu.memory_space<vmem>>, %arg4: memref<64x64xbf16, #tpu.memory_space<vmem>>, %arg5: memref<1x64xf32, #tpu.memory_space<vmem>>, %arg6: memref<64x64xbf16, #tpu.memory_space<vmem>>, %arg7: memref<1x64xf32, #tpu.memory_space<vmem>>, %arg8: memref<64x32xbf16, #tpu.memory_space<vmem>>, %arg9: memref<1x32xf32, #tpu.memory_space<vmem>>, %arg10: memref<8x64xf32, #tpu.memory_space<vmem>>, %arg11: memref<8x32xf32, #tpu.memory_space<vmem>>) attributes {dimension_semantics = [#tpu.dimension_semantics<parallel>], iteration_bounds = array<i64: 1>, scalar_prefetch = 0 : i64, scratch_operands = 0 : i64, tpu.core_type = #tpu.core_type<tc>, window_params = [{transform_indices = @transform_0, window_bounds = array<i64: 8, 32>}, {pipeline_mode = #tpu.pipeline_mode<synchronous>, transform_indices = @transform_1, window_bounds = array<i64: 32, 64>}, {pipeline_mode = #tpu.pipeline_mode<synchronous>, transform_indices = @transform_2, window_bounds = array<i64: 1, 64>}, {pipeline_mode = #tpu.pipeline_mode<synchronous>, transform_indices = @transform_3, window_bounds = array<i64: 64, 64>}, {pipeline_mode = #tpu.pipeline_mode<synchronous>, transform_indices = @transform_4, window_bounds = array<i64: 1, 64>}, {pipeline_mode = #tpu.pipeline_mode<synchronous>, transform_indices = @transform_5, window_bounds = array<i64: 64, 64>}, {pipeline_mode = #tpu.pipeline_mode<synchronous>, transform_indices = @transform_6, window_bounds = array<i64: 1, 64>}, {pipeline_mode = #tpu.pipeline_mode<synchronous>, transform_indices = @transform_7, window_bounds = array<i64: 64, 32>}, {pipeline_mode = #tpu.pipeline_mode<synchronous>, transform_indices = @transform_8, window_bounds = array<i64: 1, 32>}, {transform_indices = @transform_9, window_bounds = array<i64: 8, 64>}, {transform_indices = @transform_10, window_bounds = array<i64: 8, 32>}]} {
    %c0 = arith.constant 0 : index
    %c0_0 = arith.constant 0 : index
    %0 = vector.load %arg1[%c0, %c0_0] : memref<8x32xf32, #tpu.memory_space<vmem>>, vector<8x32xf32>
    %1 = arith.truncf %0 : vector<8x32xf32> to vector<8x32xbf16>
    %c0_1 = arith.constant 0 : index
    %c0_2 = arith.constant 0 : index
    %2 = vector.load %arg2[%c0_1, %c0_2] : memref<32x64xbf16, #tpu.memory_space<vmem>>, vector<32x64xbf16>
    %cst = arith.constant dense<0.000000e+00> : vector<8x64xf32>
    %3 = tpu.matmul %1, %2, %cst {dimension_numbers = #tpu.dot_dimension_numbers<[1], [0], [0], [1], [0, 0, 1, 1], [], []>} : vector<8x32xbf16>, vector<32x64xbf16>, vector<8x64xf32> -> vector<8x64xf32>
    %c0_3 = arith.constant 0 : index
    %c0_4 = arith.constant 0 : index
    %4 = vector.load %arg3[%c0_3, %c0_4] : memref<1x64xf32, #tpu.memory_space<vmem>>, vector<1x64xf32>
    %5 = vector.broadcast %4 : vector<1x64xf32> to vector<8x64xf32>
    %6 = arith.addf %3, %5 : vector<8x64xf32>
    %cst_5 = arith.constant 0.000000e+00 : f32
    %7 = vector.broadcast %cst_5 : f32 to vector<8x64xf32>
    %8 = arith.maximumf %6, %7 : vector<8x64xf32>
    %9 = arith.truncf %8 : vector<8x64xf32> to vector<8x64xbf16>
    %c0_6 = arith.constant 0 : index
    %c0_7 = arith.constant 0 : index
    %10 = vector.load %arg4[%c0_6, %c0_7] : memref<64x64xbf16, #tpu.memory_space<vmem>>, vector<64x64xbf16>
    %cst_8 = arith.constant dense<0.000000e+00> : vector<8x64xf32>
    %11 = tpu.matmul %9, %10, %cst_8 {dimension_numbers = #tpu.dot_dimension_numbers<[1], [0], [0], [1], [0, 0, 1, 1], [], []>} : vector<8x64xbf16>, vector<64x64xbf16>, vector<8x64xf32> -> vector<8x64xf32>
    %c0_9 = arith.constant 0 : index
    %c0_10 = arith.constant 0 : index
    %12 = vector.load %arg5[%c0_9, %c0_10] : memref<1x64xf32, #tpu.memory_space<vmem>>, vector<1x64xf32>
    %13 = vector.broadcast %12 : vector<1x64xf32> to vector<8x64xf32>
    %14 = arith.addf %11, %13 : vector<8x64xf32>
    %cst_11 = arith.constant 0.000000e+00 : f32
    %15 = vector.broadcast %cst_11 : f32 to vector<8x64xf32>
    %16 = arith.maximumf %14, %15 : vector<8x64xf32>
    %c0_12 = arith.constant 0 : index
    %c0_13 = arith.constant 0 : index
    %17 = vector.load %arg10[%c0_12, %c0_13] : memref<8x64xf32, #tpu.memory_space<vmem>>, vector<8x64xf32>
    tpu.vector_store %arg10[%c0_12, %c0_13], %16 {strides = array<i32>} : memref<8x64xf32, #tpu.memory_space<vmem>>, vector<8x64xf32>,
    %18 = arith.truncf %16 : vector<8x64xf32> to vector<8x64xbf16>
    %c0_14 = arith.constant 0 : index
    %c0_15 = arith.constant 0 : index
    %19 = vector.load %arg6[%c0_14, %c0_15] : memref<64x64xbf16, #tpu.memory_space<vmem>>, vector<64x64xbf16>
    %cst_16 = arith.constant dense<0.000000e+00> : vector<8x64xf32>
    %20 = tpu.matmul %18, %19, %cst_16 {dimension_numbers = #tpu.dot_dimension_numbers<[1], [0], [0], [1], [0, 0, 1, 1], [], []>} : vector<8x64xbf16>, vector<64x64xbf16>, vector<8x64xf32> -> vector<8x64xf32>
    %c0_17 = arith.constant 0 : index
    %c0_18 = arith.constant 0 : index
    %21 = vector.load %arg7[%c0_17, %c0_18] : memref<1x64xf32, #tpu.memory_space<vmem>>, vector<1x64xf32>
    %22 = vector.broadcast %21 : vector<1x64xf32> to vector<8x64xf32>
    %23 = arith.addf %20, %22 : vector<8x64xf32>
    %cst_19 = arith.constant 0.000000e+00 : f32
    %24 = vector.broadcast %cst_19 : f32 to vector<8x64xf32>
    %25 = arith.maximumf %23, %24 : vector<8x64xf32>
    %26 = arith.truncf %25 : vector<8x64xf32> to vector<8x64xbf16>
    %c0_20 = arith.constant 0 : index
    %c0_21 = arith.constant 0 : index
    %27 = vector.load %arg8[%c0_20, %c0_21] : memref<64x32xbf16, #tpu.memory_space<vmem>>, vector<64x32xbf16>
    %cst_22 = arith.constant dense<0.000000e+00> : vector<8x32xf32>
    %28 = tpu.matmul %26, %27, %cst_22 {dimension_numbers = #tpu.dot_dimension_numbers<[1], [0], [0], [1], [0, 0, 1, 1], [], []>} : vector<8x64xbf16>, vector<64x32xbf16>, vector<8x32xf32> -> vector<8x32xf32>
    %c0_23 = arith.constant 0 : index
    %c0_24 = arith.constant 0 : index
    %29 = vector.load %arg9[%c0_23, %c0_24] : memref<1x32xf32, #tpu.memory_space<vmem>>, vector<1x32xf32>
    %30 = vector.broadcast %29 : vector<1x32xf32> to vector<8x32xf32>
    %31 = arith.addf %28, %30 : vector<8x32xf32>
    %c0_25 = arith.constant 0 : index
    %c0_26 = arith.constant 0 : index
    %32 = vector.load %arg11[%c0_25, %c0_26] : memref<8x32xf32, #tpu.memory_space<vmem>>, vector<8x32xf32>
    tpu.vector_store %arg11[%c0_25, %c0_26], %31 {strides = array<i32>} : memref<8x32xf32, #tpu.memory_space<vmem>>, vector<8x32xf32>,
    return
  }
  func.func @transform_0(%arg0: i32) -> (i32, i32) {
    %c0_i32 = arith.constant 0 : i32
    %c0_i32_0 = arith.constant 0 : i32
    return %arg0, %c0_i32 : i32, i32
  }
  func.func @transform_1(%arg0: i32) -> (i32, i32) {
    %c0_i32 = arith.constant 0 : i32
    %c0_i32_0 = arith.constant 0 : i32
    %c0_i32_1 = arith.constant 0 : i32
    return %c0_i32, %c0_i32_0 : i32, i32
  }
  func.func @transform_2(%arg0: i32) -> (i32, i32) {
    %c0_i32 = arith.constant 0 : i32
    %c0_i32_0 = arith.constant 0 : i32
    %c0_i32_1 = arith.constant 0 : i32
    return %c0_i32, %c0_i32_0 : i32, i32
  }
  func.func @transform_3(%arg0: i32) -> (i32, i32) {
    %c0_i32 = arith.constant 0 : i32
    %c0_i32_0 = arith.constant 0 : i32
    %c0_i32_1 = arith.constant 0 : i32
    return %c0_i32, %c0_i32_0 : i32, i32
  }
  func.func @transform_4(%arg0: i32) -> (i32, i32) {
    %c0_i32 = arith.constant 0 : i32
    %c0_i32_0 = arith.constant 0 : i32
    %c0_i32_1 = arith.constant 0 : i32
    return %c0_i32, %c0_i32_0 : i32, i32
  }
  func.func @transform_5(%arg0: i32) -> (i32, i32) {
    %c0_i32 = arith.constant 0 : i32
    %c0_i32_0 = arith.constant 0 : i32
    %c0_i32_1 = arith.constant 0 : i32
    return %c0_i32, %c0_i32_0 : i32, i32
  }
  func.func @transform_6(%arg0: i32) -> (i32, i32) {
    %c0_i32 = arith.constant 0 : i32
    %c0_i32_0 = arith.constant 0 : i32
    %c0_i32_1 = arith.constant 0 : i32
    return %c0_i32, %c0_i32_0 : i32, i32
  }
  func.func @transform_7(%arg0: i32) -> (i32, i32) {
    %c0_i32 = arith.constant 0 : i32
    %c0_i32_0 = arith.constant 0 : i32
    %c0_i32_1 = arith.constant 0 : i32
    return %c0_i32, %c0_i32_0 : i32, i32
  }
  func.func @transform_8(%arg0: i32) -> (i32, i32) {
    %c0_i32 = arith.constant 0 : i32
    %c0_i32_0 = arith.constant 0 : i32
    %c0_i32_1 = arith.constant 0 : i32
    return %c0_i32, %c0_i32_0 : i32, i32
  }
  func.func @transform_9(%arg0: i32) -> (i32, i32) {
    %c0_i32 = arith.constant 0 : i32
    %c0_i32_0 = arith.constant 0 : i32
    return %arg0, %c0_i32 : i32, i32
  }
  func.func @transform_10(%arg0: i32) -> (i32, i32) {
    %c0_i32 = arith.constant 0 : i32
    %c0_i32_0 = arith.constant 0 : i32
    return %arg0, %c0_i32 : i32, i32
  }
}

</mosaic_0001>

<llo_original>
// kernel: tpu_custom_call.1
$region0: #{tpu_custom_call.1}
  #allocation0 [shape = 'u32[]', space=smem, size = 0x4, offset = 0x4, fixed_abs, tag = 'smem constant byte address 0x4 - core index']
  #allocation1 [shape = 'u32[72,128]{1,0:T(1,128)}', space=vmem, size = 0x9000, scoped, tag = 'internal scratch']
  %s0 = inlined_call_operand.hbm [shape: f32[8,32], index: 0, kind: input, shape index: {}]
  %s1 = inlined_call_operand.vmem [shape: bf16[32,64], index: 1, kind: input, shape index: {}]
  %s2 = inlined_call_operand.vmem [shape: f32[1,64], index: 2, kind: input, shape index: {}]
  %s3 = inlined_call_operand.vmem [shape: bf16[64,64], index: 3, kind: input, shape index: {}]
  %s4 = inlined_call_operand.vmem [shape: f32[1,64], index: 4, kind: input, shape index: {}]
  %s5 = inlined_call_operand.hbm [shape: bf16[64,64], index: 5, kind: input, shape index: {}]
  %s6 = inlined_call_operand.vmem [shape: f32[1,64], index: 6, kind: input, shape index: {}]
  %s7 = inlined_call_operand.vmem [shape: bf16[64,32], index: 7, kind: input, shape index: {}]
  %s8 = inlined_call_operand.vmem [shape: f32[1,32], index: 8, kind: input, shape index: {}]
  %s9 = inlined_call_operand.hbm [shape: f32[8,64], index: 9, kind: output, shape index: {0}]
  %s10 = inlined_call_operand.hbm [shape: f32[8,32], index: 10, kind: output, shape index: {1}]
  %11 = xla_tuple %s9, %s10
  %s12 = sld [smem:[#allocation0]]
  $region62: #{tpu_custom_call.1} parent=0
    _
  %s14 = ssub.s32 1, %s12
  %s15 = scalar_select 0, %s14, %s12
  $region1: #{tpu_custom_call.1} parent=0
    #allocation2 [shape = 'u8[4096]{0}', space=vmem, size = 0x1000, scoped, tag = 'input window, operand 0, single buffered']
    #allocation3 [shape = 's32[1]{0}', space=sflag, size = 0x4, scoped, tag = 'scoped memory for tpu_custom_call.1']
    #allocation4 [shape = 's32[1]{0}', space=sflag, size = 0x4, scoped, tag = 'scoped memory for tpu_custom_call.1']
    #allocation5 [shape = 'u8[16384]{0}', space=vmem, size = 0x4000, scoped, tag = 'input window, operand 5, single buffered']
    #allocation6 [shape = 's32[1]{0}', space=sflag, size = 0x4, scoped, tag = 'scoped memory for tpu_custom_call.1']
    #allocation7 [shape = 'u8[4096]{0}', space=vmem, size = 0x1000, scoped, tag = 'output window, operand 0, single buffered']
    #allocation8 [shape = 'u8[4096]{0}', space=vmem, size = 0x1000, scoped, tag = 'output window, operand 1, single buffered']
    #allocation9 [shape = 's32[1]{0}', space=sflag, size = 0x4, scoped, tag = 'scoped memory for tpu_custom_call.1']
    %16 = vsyncpa [#allocation3], 0
    %17 = vsyncpa [#allocation6], 0
    %18 = vsyncpa [#allocation4], 0
    %19 = vsyncpa [#allocation9], 0
    // Predicated region
    $region2: #{tpu_custom_call.1} parent=1 // pred_check
      _
    $region3: #{tpu_custom_call.1} parent=1 // pred_check_branch
      %21 = sbr.rel (0) target = $region5
    $region4: #{tpu_custom_call.1} parent=1 // pred_region
      %23 = vsyncadd [#allocation3], 0
      %s25 = sshll.u32 %s0, 4
      %s26 = int_to_ptr.hbm [resolvable:$true] %s25
      %s27 = sshll.u32 [#allocation2], 4
      %s28 = int_to_ptr.vmem [resolvable:$true] %s27
      %30 = dma.hbm_to_vmem [thread:$0]  %s26, 128, %s28, [#allocation3]
    $region5: #{tpu_custom_call.1} parent=1 // pred_fallthru
      _
    // Predicated region
    $region6: #{tpu_custom_call.1} parent=1 // pred_check
      _
    $region7: #{tpu_custom_call.1} parent=1 // pred_check_branch
      %32 = sbr.rel (0) target = $region9
    $region8: #{tpu_custom_call.1} parent=1 // pred_region
      _
    $region9: #{tpu_custom_call.1} parent=1 // pred_fallthru
      _
    // Predicated region
    $region10: #{tpu_custom_call.1} parent=1 // pred_check
      _
    $region11: #{tpu_custom_call.1} parent=1 // pred_check_branch
      %34 = sbr.rel (0) target = $region13
    $region12: #{tpu_custom_call.1} parent=1 // pred_region
      _
    $region13: #{tpu_custom_call.1} parent=1 // pred_fallthru
      _
    // Predicated region
    $region14: #{tpu_custom_call.1} parent=1 // pred_check
      _
    $region15: #{tpu_custom_call.1} parent=1 // pred_check_branch
      %36 = sbr.rel (0) target = $region17
    $region16: #{tpu_custom_call.1} parent=1 // pred_region
      _
    $region17: #{tpu_custom_call.1} parent=1 // pred_fallthru
      _
    // Predicated region
    $region18: #{tpu_custom_call.1} parent=1 // pred_check
      _
    $region19: #{tpu_custom_call.1} parent=1 // pred_check_branch
      %38 = sbr.rel (0) target = $region21
    $region20: #{tpu_custom_call.1} parent=1 // pred_region
      _
    $region21: #{tpu_custom_call.1} parent=1 // pred_fallthru
      _
    // Predicated region
    $region22: #{tpu_custom_call.1} parent=1 // pred_check
      _
    $region23: #{tpu_custom_call.1} parent=1 // pred_check_branch
      %40 = sbr.rel (0) target = $region25
    $region24: #{tpu_custom_call.1} parent=1 // pred_region
      %42 = vsyncadd [#allocation6], 0
      %s43 = sshll.u32 %s5, 4
      %s44 = int_to_ptr.hbm [resolvable:$true] %s43
      %s45 = sshll.u32 [#allocation5], 4
      %s46 = int_to_ptr.vmem [resolvable:$true] %s45
      %51 = dma.hbm_to_vmem [thread:$0]  %s44, 512, %s46, [#allocation6], 64, 64, 4
    $region25: #{tpu_custom_call.1} parent=1 // pred_fallthru
      _
    // Predicated region
    $region26: #{tpu_custom_call.1} parent=1 // pred_check
      _
    $region27: #{tpu_custom_call.1} parent=1 // pred_check_branch
      %53 = sbr.rel (0) target = $region29
    $region28: #{tpu_custom_call.1} parent=1 // pred_region
      _
    $region29: #{tpu_custom_call.1} parent=1 // pred_fallthru
      _
    // Predicated region
    $region30: #{tpu_custom_call.1} parent=1 // pred_check
      _
    $region31: #{tpu_custom_call.1} parent=1 // pred_check_branch
      %55 = sbr.rel (0) target = $region33
    $region32: #{tpu_custom_call.1} parent=1 // pred_region
      _
    $region33: #{tpu_custom_call.1} parent=1 // pred_fallthru
      _
    // Predicated region
    $region34: #{tpu_custom_call.1} parent=1 // pred_check
      _
    $region35: #{tpu_custom_call.1} parent=1 // pred_check_branch
      %57 = sbr.rel (0) target = $region37
    $region36: #{tpu_custom_call.1} parent=1 // pred_region
      _
    $region37: #{tpu_custom_call.1} parent=1 // pred_fallthru
      _
    // Predicated region
    $region38: #{tpu_custom_call.1} parent=1 // pred_check
      _
    $region39: #{tpu_custom_call.1} parent=1 // pred_check_branch
      %59 = sbr.rel (0) target = $region41
    $region40: #{tpu_custom_call.1} parent=1 // pred_region
      %61 = dma.done [#allocation3], 128
    $region41: #{tpu_custom_call.1} parent=1 // pred_fallthru
      _
    // Predicated region
    $region42: #{tpu_custom_call.1} parent=1 // pred_check
      _
    $region43: #{tpu_custom_call.1} parent=1 // pred_check_branch
      %63 = sbr.rel (0) target = $region45
    $region44: #{tpu_custom_call.1} parent=1 // pred_region
      %65 = dma.done [#allocation6], 512
    $region45: #{tpu_custom_call.1} parent=1 // pred_fallthru
      _
    %v67 = vld [vmem:[#allocation2] sm:$0xff]
    %v68 = vpack.c.bf16 %v67, %v67
    %v69 = vld [vmem:[%s1] sm:$0xf]
    %v70 = vld [vmem:[%s1 + $0x4] sm:$0xf]
    %v71 = vld [vmem:[%s1 + $0x8] sm:$0xf]
    %v72 = vld [vmem:[%s1 + $0xc] sm:$0xf]
    %v73 = vld [vmem:[%s2] sm:$0x1]
    %v75 = vperm.slane %v73, 0
    %v81 = vunpack.c.l.b16 %v69
    %v82 = vunpack.c.l.b16 %v70
    %v83 = vunpack.c.l.b16 %v71
    %v84 = vunpack.c.l.b16 %v72
    %v85 = vpack.c.b16 %v82, %v81
    %v86 = vpack.c.b16 %v84, %v83
    %vm89 = vcmask 261120
    %v91 = vsel %vm89, %v68, 0
    %93 = vmatpush.bf16.msra.mxu0 0
    %94 = vmatpush.bf16.msra.mxu0 0
    %95 = vmatpush.bf16.msra.mxu0 0
    %96 = vmatpush.bf16.msra.mxu0 0
    %97 = vmatpush.bf16.msra.mxu0 0
    %98 = vmatpush.bf16.msra.mxu0 0
    %99 = vmatpush.bf16.msra.mxu0 %v86
    %100 = vmatpush.bf16.msra.mxu0 %v85
    %101 = vmatmul.bf16.gmra.mxu0 %v91
    %v102 = vpop.f32.mrf.mxu0
    %v103 = vadd.f32 %v75, %v102
    %v104 = vpop.f32.mrf.mxu0
    %105 = vdwg.mxu0
    %v106 = vmax.f32 %v103, 0.0
    %v107 = vpack.c.bf16 %v106, %v106
    %v108 = vld [vmem:[%s3] sm:$0xf]
    %v109 = vld [vmem:[%s3 + $0x4] sm:$0xf]
    %v110 = vld [vmem:[%s3 + $0x8] sm:$0xf]
    %v111 = vld [vmem:[%s3 + $0xc] sm:$0xf]
    %v112 = vld [vmem:[%s3 + $0x10] sm:$0xf]
    %v113 = vld [vmem:[%s3 + $0x14] sm:$0xf]
    %v114 = vld [vmem:[%s3 + $0x18] sm:$0xf]
    %v115 = vld [vmem:[%s3 + $0x1c] sm:$0xf]
    %v116 = vld [vmem:[%s4] sm:$0x1]
    %v118 = vperm.slane %v116, 0
    %v128 = vunpack.c.l.b16 %v108
    %v129 = vunpack.c.l.b16 %v109
    %v130 = vunpack.c.l.b16 %v110
    %v131 = vunpack.c.l.b16 %v111
    %v132 = vunpack.c.l.b16 %v112
    %v133 = vunpack.c.l.b16 %v113
    %v134 = vunpack.c.l.b16 %v114
    %v135 = vunpack.c.l.b16 %v115
    %v136 = vpack.c.b16 %v129, %v128
    %v137 = vpack.c.b16 %v131, %v130
    %v138 = vpack.c.b16 %v133, %v132
    %v139 = vpack.c.b16 %v135, %v134
    %vm144 = vcmask 523264
    %v146 = vsel %vm144, %v107, 0
    %148 = vmatpush.bf16.msra.mxu0 0
    %149 = vmatpush.bf16.msra.mxu0 0
    %150 = vmatpush.bf16.msra.mxu0 0
    %151 = vmatpush.bf16.msra.mxu0 0
    %152 = vmatpush.bf16.msra.mxu0 %v139
    %153 = vmatpush.bf16.msra.mxu0 %v138
    %154 = vmatpush.bf16.msra.mxu0 %v137
    %155 = vmatpush.bf16.msra.mxu0 %v136
    %156 = vmatmul.bf16.gmra.mxu0 %v146
    %v157 = vpop.f32.mrf.mxu0
    %v158 = vadd.f32 %v118, %v157
    %v159 = vpop.f32.mrf.mxu0
    %160 = vdwg.mxu0
    %v161 = vmax.f32 %v158, 0.0
    %162 = vst.msk [vmem:[#allocation7] sm:$0xff] %vm144, %v161
    %v163 = vpack.c.bf16 %v161, %v161
    %v164 = vld [vmem:[#allocation5] sm:$0xf]
    %v165 = vld [vmem:[#allocation5 + $0x4] sm:$0xf]
    %v166 = vld [vmem:[#allocation5 + $0x8] sm:$0xf]
    %v167 = vld [vmem:[#allocation5 + $0xc] sm:$0xf]
    %v168 = vld [vmem:[#allocation5 + $0x10] sm:$0xf]
    %v169 = vld [vmem:[#allocation5 + $0x14] sm:$0xf]
    %v170 = vld [vmem:[#allocation5 + $0x18] sm:$0xf]
    %v171 = vld [vmem:[#allocation5 + $0x1c] sm:$0xf]
    %v172 = vld [vmem:[%s6] sm:$0x1]
    %v174 = vperm.slane %v172, 0
    %v184 = vunpack.c.l.b16 %v164
    %v185 = vunpack.c.l.b16 %v165
    %v186 = vunpack.c.l.b16 %v166
    %v187 = vunpack.c.l.b16 %v167
    %v188 = vunpack.c.l.b16 %v168
    %v189 = vunpack.c.l.b16 %v169
    %v190 = vunpack.c.l.b16 %v170
    %v191 = vunpack.c.l.b16 %v171
    %v192 = vpack.c.b16 %v185, %v184
    %v193 = vpack.c.b16 %v187, %v186
    %v194 = vpack.c.b16 %v189, %v188
    %v195 = vpack.c.b16 %v191, %v190
    %v201 = vsel %vm144, %v163, 0
    %203 = vmatpush.bf16.msra.mxu0 0
    %204 = vmatpush.bf16.msra.mxu0 0
    %205 = vmatpush.bf16.msra.mxu0 0
    %206 = vmatpush.bf16.msra.mxu0 0
    %207 = vmatpush.bf16.msra.mxu0 %v195
    %208 = vmatpush.bf16.msra.mxu0 %v194
    %209 = vmatpush.bf16.msra.mxu0 %v193
    %210 = vmatpush.bf16.msra.mxu0 %v192
    %211 = vmatmul.bf16.gmra.mxu0 %v201
    %v212 = vpop.f32.mrf.mxu0
    %v213 = vadd.f32 %v174, %v212
    %v214 = vpop.f32.mrf.mxu0
    %215 = vdwg.mxu0
    %v216 = vmax.f32 %v213, 0.0
    %v217 = vpack.c.bf16 %v216, %v216
    %v218 = vld [vmem:[%s7] sm:$0xf]
    %v219 = vld [vmem:[%s7 + $0x4] sm:$0xf]
    %v220 = vld [vmem:[%s7 + $0x8] sm:$0xf]
    %v221 = vld [vmem:[%s7 + $0xc] sm:$0xf]
    %v222 = vld [vmem:[%s7 + $0x10] sm:$0xf]
    %v223 = vld [vmem:[%s7 + $0x14] sm:$0xf]
    %v224 = vld [vmem:[%s7 + $0x18] sm:$0xf]
    %v225 = vld [vmem:[%s7 + $0x1c] sm:$0xf]
    %v226 = vld [vmem:[%s8] sm:$0x1]
    %v228 = vperm.slane %v226, 0
    %v238 = vunpack.c.l.b16 %v218
    %v239 = vunpack.c.l.b16 %v219
    %v240 = vunpack.c.l.b16 %v220
    %v241 = vunpack.c.l.b16 %v221
    %v242 = vunpack.c.l.b16 %v222
    %v243 = vunpack.c.l.b16 %v223
    %v244 = vunpack.c.l.b16 %v224
    %v245 = vunpack.c.l.b16 %v225
    %v246 = vpack.c.b16 %v239, %v238
    %v247 = vpack.c.b16 %v241, %v240
    %v248 = vpack.c.b16 %v243, %v242
    %v249 = vpack.c.b16 %v245, %v244
    %v255 = vsel %vm144, %v217, 0
    %257 = vmatpush.bf16.msra.mxu0 0
    %258 = vmatpush.bf16.msra.mxu0 0
    %259 = vmatpush.bf16.msra.mxu0 0
    %260 = vmatpush.bf16.msra.mxu0 0
    %261 = vmatpush.bf16.msra.mxu0 %v249
    %262 = vmatpush.bf16.msra.mxu0 %v248
    %263 = vmatpush.bf16.msra.mxu0 %v247
    %264 = vmatpush.bf16.msra.mxu0 %v246
    %265 = vmatmul.bf16.gmra.mxu0 %v255
    %v266 = vpop.f32.mrf.mxu0
    %v267 = vadd.f32 %v228, %v266
    %v268 = vpop.f32.mrf.mxu0
    %269 = vdwg.mxu0
    %270 = vst.msk [vmem:[#allocation8] sm:$0xff] %vm89, %v267
    // Predicated region
    $region46: #{tpu_custom_call.1} parent=1 // pred_check
      _
    $region47: #{tpu_custom_call.1} parent=1 // pred_check_branch
      %272 = sbr.rel (0) target = $region49
    $region48: #{tpu_custom_call.1} parent=1 // pred_region
      %274 = vsyncadd [#allocation4], 0
      %s276 = sshll.u32 [#allocation7], 4
      %s277 = int_to_ptr.vmem [resolvable:$true] %s276
      %s278 = sshll.u32 %s9, 4
      %s279 = int_to_ptr.hbm [resolvable:$true] %s278
      %281 = dma.vmem_to_hbm [thread:$0]  %s277, 128, %s279, [#allocation4]
    $region49: #{tpu_custom_call.1} parent=1 // pred_fallthru
      _
    // Predicated region
    $region50: #{tpu_custom_call.1} parent=1 // pred_check
      _
    $region51: #{tpu_custom_call.1} parent=1 // pred_check_branch
      %283 = sbr.rel (0) target = $region53
    $region52: #{tpu_custom_call.1} parent=1 // pred_region
      %285 = vsyncadd [#allocation9], 0
      %s287 = sshll.u32 [#allocation8], 4
      %s288 = int_to_ptr.vmem [resolvable:$true] %s287
      %s289 = sshll.u32 %s10, 4
      %s290 = int_to_ptr.hbm [resolvable:$true] %s289
      %292 = dma.vmem_to_hbm [thread:$0]  %s288, 128, %s290, [#allocation9]
    $region53: #{tpu_custom_call.1} parent=1 // pred_fallthru
      _
    // Predicated region
    $region54: #{tpu_custom_call.1} parent=1 // pred_check
      _
    $region55: #{tpu_custom_call.1} parent=1 // pred_check_branch
      %294 = sbr.rel (0) target = $region57
    $region56: #{tpu_custom_call.1} parent=1 // pred_region
      %296 = dma.done [#allocation4], 128
    $region57: #{tpu_custom_call.1} parent=1 // pred_fallthru
      _
    // Predicated region
    $region58: #{tpu_custom_call.1} parent=1 // pred_check
      _
    $region59: #{tpu_custom_call.1} parent=1 // pred_check_branch
      %298 = sbr.rel (0) target = $region61
    $region60: #{tpu_custom_call.1} parent=1 // pred_region
      %300 = dma.done [#allocation9], 128
    $region61: #{tpu_custom_call.1} parent=1 // pred_fallthru
      _
    %301 = vsyncpa [#allocation3], 1
    %302 = vsyncpa [#allocation6], 1
    %303 = vsyncpa [#allocation4], 1
    %304 = vsyncpa [#allocation9], 1

// kernel: tpu_custom_call.1
$region0: #{tpu_custom_call.1}
  #allocation0 [shape = 'u32[]', space=smem, size = 0x4, offset = 0x4, fixed_abs, tag = 'smem constant byte address 0x4 - core index']
  #allocation1 [shape = 'u32[72,128]{1,0:T(1,128)}', space=vmem, size = 0x9000, scoped, tag = 'internal scratch']
  %s0 = inlined_call_operand.hbm [shape: f32[8,32], index: 0, kind: input, shape index: {}]
  %s1 = inlined_call_operand.vmem [shape: bf16[32,64], index: 1, kind: input, shape index: {}]
  %s2 = inlined_call_operand.vmem [shape: f32[1,64], index: 2, kind: input, shape index: {}]
  %s3 = inlined_call_operand.vmem [shape: bf16[64,64], index: 3, kind: input, shape index: {}]
  %s4 = inlined_call_operand.vmem [shape: f32[1,64], index: 4, kind: input, shape index: {}]
  %s5 = inlined_call_operand.hbm [shape: bf16[64,64], index: 5, kind: input, shape index: {}]
  %s6 = inlined_call_operand.vmem [shape: f32[1,64], index: 6, kind: input, shape index: {}]
  %s7 = inlined_call_operand.vmem [shape: bf16[64,32], index: 7, kind: input, shape index: {}]
  %s8 = inlined_call_operand.vmem [shape: f32[1,32], index: 8, kind: input, shape index: {}]
  %s9 = inlined_call_operand.hbm [shape: f32[8,64], index: 9, kind: output, shape index: {0}]
  %s10 = inlined_call_operand.hbm [shape: f32[8,32], index: 10, kind: output, shape index: {1}]
  %11 = xla_tuple %s9, %s10
  %s12 = sld [smem:[#allocation0]]
  $region62: #{tpu_custom_call.1} parent=0
    _
  %s14 = ssub.s32 1, %s12
  %s15 = scalar_select 0, %s14, %s12
  $region1: #{tpu_custom_call.1} parent=0
    #allocation2 [shape = 'u8[4096]{0}', space=vmem, size = 0x1000, scoped, tag = 'input window, operand 0, single buffered']
    #allocation3 [shape = 's32[1]{0}', space=sflag, size = 0x4, scoped, tag = 'scoped memory for tpu_custom_call.1']
    #allocation4 [shape = 's32[1]{0}', space=sflag, size = 0x4, scoped, tag = 'scoped memory for tpu_custom_call.1']
    #allocation5 [shape = 'u8[16384]{0}', space=vmem, size = 0x4000, scoped, tag = 'input window, operand 5, single buffered']
    #allocation6 [shape = 's32[1]{0}', space=sflag, size = 0x4, scoped, tag = 'scoped memory for tpu_custom_call.1']
    #allocation7 [shape = 'u8[4096]{0}', space=vmem, size = 0x1000, scoped, tag = 'output window, operand 0, single buffered']
    #allocation8 [shape = 'u8[4096]{0}', space=vmem, size = 0x1000, scoped, tag = 'output window, operand 1, single buffered']
    #allocation9 [shape = 's32[1]{0}', space=sflag, size = 0x4, scoped, tag = 'scoped memory for tpu_custom_call.1']
    %16 = vsyncpa [#allocation3], 0
    %17 = vsyncpa [#allocation6], 0
    %18 = vsyncpa [#allocation4], 0
    %19 = vsyncpa [#allocation9], 0
    // Predicated region
    $region2: #{tpu_custom_call.1} parent=1 // pred_check
      _
    $region3: #{tpu_custom_call.1} parent=1 // pred_check_branch
      %21 = sbr.rel (0) target = $region5
    $region4: #{tpu_custom_call.1} parent=1 // pred_region
      %23 = vsyncadd [#allocation3], 0
      %s25 = sshll.u32 %s0, 4
      %s26 = int_to_ptr.hbm [resolvable:$true] %s25
      %s27 = sshll.u32 [#allocation2], 4
      %s28 = int_to_ptr.vmem [resolvable:$true] %s27
      %30 = dma.hbm_to_vmem [thread:$0]  %s26, 128, %s28, [#allocation3]
    $region5: #{tpu_custom_call.1} parent=1 // pred_fallthru
      _
    // Predicated region
    $region6: #{tpu_custom_call.1} parent=1 // pred_check
      _
    $region7: #{tpu_custom_call.1} parent=1 // pred_check_branch
      %32 = sbr.rel (0) target = $region9
    $region8: #{tpu_custom_call.1} parent=1 // pred_region
      _
    $region9: #{tpu_custom_call.1} parent=1 // pred_fallthru
      _
    // Predicated region
    $region10: #{tpu_custom_call.1} parent=1 // pred_check
      _
    $region11: #{tpu_custom_call.1} parent=1 // pred_check_branch
      %34 = sbr.rel (0) target = $region13
    $region12: #{tpu_custom_call.1} parent=1 // pred_region
      _
    $region13: #{tpu_custom_call.1} parent=1 // pred_fallthru
      _
    // Predicated region
    $region14: #{tpu_custom_call.1} parent=1 // pred_check
      _
    $region15: #{tpu_custom_call.1} parent=1 // pred_check_branch
      %36 = sbr.rel (0) target = $region17
    $region16: #{tpu_custom_call.1} parent=1 // pred_region
      _
    $region17: #{tpu_custom_call.1} parent=1 // pred_fallthru
      _
    // Predicated region
    $region18: #{tpu_custom_call.1} parent=1 // pred_check
      _
    $region19: #{tpu_custom_call.1} parent=1 // pred_check_branch
      %38 = sbr.rel (0) target = $region21
    $region20: #{tpu_custom_call.1} parent=1 // pred_region
      _
    $region21: #{tpu_custom_call.1} parent=1 // pred_fallthru
      _
    // Predicated region
    $region22: #{tpu_custom_call.1} parent=1 // pred_check
      _
    $region23: #{tpu_custom_call.1} parent=1 // pred_check_branch
      %40 = sbr.rel (0) target = $region25
    $region24: #{tpu_custom_call.1} parent=1 // pred_region
      %42 = vsyncadd [#allocation6], 0
      %s43 = sshll.u32 %s5, 4
      %s44 = int_to_ptr.hbm [resolvable:$true] %s43
      %s45 = sshll.u32 [#allocation5], 4
      %s46 = int_to_ptr.vmem [resolvable:$true] %s45
      %51 = dma.hbm_to_vmem [thread:$0]  %s44, 512, %s46, [#allocation6], 64, 64, 4
    $region25: #{tpu_custom_call.1} parent=1 // pred_fallthru
      _
    // Predicated region
    $region26: #{tpu_custom_call.1} parent=1 // pred_check
      _
    $region27: #{tpu_custom_call.1} parent=1 // pred_check_branch
      %53 = sbr.rel (0) target = $region29
    $region28: #{tpu_custom_call.1} parent=1 // pred_region
      _
    $region29: #{tpu_custom_call.1} parent=1 // pred_fallthru
      _
    // Predicated region
    $region30: #{tpu_custom_call.1} parent=1 // pred_check
      _
    $region31: #{tpu_custom_call.1} parent=1 // pred_check_branch
      %55 = sbr.rel (0) target = $region33
    $region32: #{tpu_custom_call.1} parent=1 // pred_region
      _
    $region33: #{tpu_custom_call.1} parent=1 // pred_fallthru
      _
    // Predicated region
    $region34: #{tpu_custom_call.1} parent=1 // pred_check
      _
    $region35: #{tpu_custom_call.1} parent=1 // pred_check_branch
      %57 = sbr.rel (0) target = $region37
    $region36: #{tpu_custom_call.1} parent=1 // pred_region
      _
    $region37: #{tpu_custom_call.1} parent=1 // pred_fallthru
      _
    // Predicated region
    $region38: #{tpu_custom_call.1} parent=1 // pred_check
      _
    $region39: #{tpu_custom_call.1} parent=1 // pred_check_branch
      %59 = sbr.rel (0) target = $region41
    $region40: #{tpu_custom_call.1} parent=1 // pred_region
      %61 = dma.done [#allocation3], 128
    $region41: #{tpu_custom_call.1} parent=1 // pred_fallthru
      _
    // Predicated region
    $region42: #{tpu_custom_call.1} parent=1 // pred_check
      _
    $region43: #{tpu_custom_call.1} parent=1 // pred_check_branch
      %63 = sbr.rel (0) target = $region45
    $region44: #{tpu_custom_call.1} parent=1 // pred_region
      %65 = dma.done [#allocation6], 512
    $region45: #{tpu_custom_call.1} parent=1 // pred_fallthru
      _
    %v67 = vld [vmem:[#allocation2] sm:$0xff]
    %v68 = vpack.c.bf16 %v67, %v67
    %v69 = vld [vmem:[%s1] sm:$0xf]
    %v70 = vld [vmem:[%s1 + $0x4] sm:$0xf]
    %v71 = vld [vmem:[%s1 + $0x8] sm:$0xf]
    %v72 = vld [vmem:[%s1 + $0xc] sm:$0xf]
    %v73 = vld [vmem:[%s2] sm:$0x1]
    %v75 = vperm.slane %v73, 0
    %v81 = vunpack.c.l.b16 %v69
    %v82 = vunpack.c.l.b16 %v70
    %v83 = vunpack.c.l.b16 %v71
    %v84 = vunpack.c.l.b16 %v72
    %v85 = vpack.c.b16 %v82, %v81
    %v86 = vpack.c.b16 %v84, %v83
    %vm89 = vcmask 261120
    %v91 = vsel %vm89, %v68, 0
    %93 = vmatpush.bf16.msra.mxu0 0
    %94 = vmatpush.bf16.msra.mxu0 0
    %95 = vmatpush.bf16.msra.mxu0 0
    %96 = vmatpush.bf16.msra.mxu0 0
    %97 = vmatpush.bf16.msra.mxu0 0
    %98 = vmatpush.bf16.msra.mxu0 0
    %99 = vmatpush.bf16.msra.mxu0 %v86
    %100 = vmatpush.bf16.msra.mxu0 %v85
    %101 = vmatmul.bf16.gmra.mxu0 %v91
    %v102 = vpop.f32.mrf.mxu0
    %v103 = vadd.f32 %v75, %v102
    %v104 = vpop.f32.mrf.mxu0
    %105 = vdwg.mxu0
    %v106 = vmax.f32 %v103, 0.0
    %v107 = vpack.c.bf16 %v106, %v106
    %v108 = vld [vmem:[%s3] sm:$0xf]
    %v109 = vld [vmem:[%s3 + $0x4] sm:$0xf]
    %v110 = vld [vmem:[%s3 + $0x8] sm:$0xf]
    %v111 = vld [vmem:[%s3 + $0xc] sm:$0xf]
    %v112 = vld [vmem:[%s3 + $0x10] sm:$0xf]
    %v113 = vld [vmem:[%s3 + $0x14] sm:$0xf]
    %v114 = vld [vmem:[%s3 + $0x18] sm:$0xf]
    %v115 = vld [vmem:[%s3 + $0x1c] sm:$0xf]
    %v116 = vld [vmem:[%s4] sm:$0x1]
    %v118 = vperm.slane %v116, 0
    %v128 = vunpack.c.l.b16 %v108
    %v129 = vunpack.c.l.b16 %v109
    %v130 = vunpack.c.l.b16 %v110
    %v131 = vunpack.c.l.b16 %v111
    %v132 = vunpack.c.l.b16 %v112
    %v133 = vunpack.c.l.b16 %v113
    %v134 = vunpack.c.l.b16 %v114
    %v135 = vunpack.c.l.b16 %v115
    %v136 = vpack.c.b16 %v129, %v128
    %v137 = vpack.c.b16 %v131, %v130
    %v138 = vpack.c.b16 %v133, %v132
    %v139 = vpack.c.b16 %v135, %v134
    %vm144 = vcmask 523264
    %v146 = vsel %vm144, %v107, 0
    %148 = vmatpush.bf16.msra.mxu0 0
    %149 = vmatpush.bf16.msra.mxu0 0
    %150 = vmatpush.bf16.msra.mxu0 0
    %151 = vmatpush.bf16.msra.mxu0 0
    %152 = vmatpush.bf16.msra.mxu0 %v139
    %153 = vmatpush.bf16.msra.mxu0 %v138
    %154 = vmatpush.bf16.msra.mxu0 %v137
    %155 = vmatpush.bf16.msra.mxu0 %v136
    %156 = vmatmul.bf16.gmra.mxu0 %v146
    %v157 = vpop.f32.mrf.mxu0
    %v158 = vadd.f32 %v118, %v157
    %v159 = vpop.f32.mrf.mxu0
    %160 = vdwg.mxu0
    %v161 = vmax.f32 %v158, 0.0
    %162 = vst.msk [vmem:[#allocation7] sm:$0xff] %vm144, %v161
    %v163 = vpack.c.bf16 %v161, %v161
    %v164 = vld [vmem:[#allocation5] sm:$0xf]
    %v165 = vld [vmem:[#allocation5 + $0x4] sm:$0xf]
    %v166 = vld [vmem:[#allocation5 + $0x8] sm:$0xf]
    %v167 = vld [vmem:[#allocation5 + $0xc] sm:$0xf]
    %v168 = vld [vmem:[#allocation5 + $0x10] sm:$0xf]
    %v169 = vld [vmem:[#allocation5 + $0x14] sm:$0xf]
    %v170 = vld [vmem:[#allocation5 + $0x18] sm:$0xf]
    %v171 = vld [vmem:[#allocation5 + $0x1c] sm:$0xf]
    %v172 = vld [vmem:[%s6] sm:$0x1]
    %v174 = vperm.slane %v172, 0
    %v184 = vunpack.c.l.b16 %v164
    %v185 = vunpack.c.l.b16 %v165
    %v186 = vunpack.c.l.b16 %v166
    %v187 = vunpack.c.l.b16 %v167
    %v188 = vunpack.c.l.b16 %v168
    %v189 = vunpack.c.l.b16 %v169
    %v190 = vunpack.c.l.b16 %v170
    %v191 = vunpack.c.l.b16 %v171
    %v192 = vpack.c.b16 %v185, %v184
    %v193 = vpack.c.b16 %v187, %v186
    %v194 = vpack.c.b16 %v189, %v188
    %v195 = vpack.c.b16 %v191, %v190
    %v201 = vsel %vm144, %v163, 0
    %203 = vmatpush.bf16.msra.mxu0 0
    %204 = vmatpush.bf16.msra.mxu0 0
    %205 = vmatpush.bf16.msra.mxu0 0
    %206 = vmatpush.bf16.msra.mxu0 0
    %207 = vmatpush.bf16.msra.mxu0 %v195
    %208 = vmatpush.bf16.msra.mxu0 %v194
    %209 = vmatpush.bf16.msra.mxu0 %v193
    %210 = vmatpush.bf16.msra.mxu0 %v192
    %211 = vmatmul.bf16.gmra.mxu0 %v201
    %v212 = vpop.f32.mrf.mxu0
    %v213 = vadd.f32 %v174, %v212
    %v214 = vpop.f32.mrf.mxu0
    %215 = vdwg.mxu0
    %v216 = vmax.f32 %v213, 0.0
    %v217 = vpack.c.bf16 %v216, %v216
    %v218 = vld [vmem:[%s7] sm:$0xf]
    %v219 = vld [vmem:[%s7 + $0x4] sm:$0xf]
    %v220 = vld [vmem:[%s7 + $0x8] sm:$0xf]
    %v221 = vld [vmem:[%s7 + $0xc] sm:$0xf]
    %v222 = vld [vmem:[%s7 + $0x10] sm:$0xf]
    %v223 = vld [vmem:[%s7 + $0x14] sm:$0xf]
    %v224 = vld [vmem:[%s7 + $0x18] sm:$0xf]
    %v225 = vld [vmem:[%s7 + $0x1c] sm:$0xf]
    %v226 = vld [vmem:[%s8] sm:$0x1]
    %v228 = vperm.slane %v226, 0
    %v238 = vunpack.c.l.b16 %v218
    %v239 = vunpack.c.l.b16 %v219
    %v240 = vunpack.c.l.b16 %v220
    %v241 = vunpack.c.l.b16 %v221
    %v242 = vunpack.c.l.b16 %v222
    %v243 = vunpack.c.l.b16 %v223
    %v244 = vunpack.c.l.b16 %v224
    %v245 = vunpack.c.l.b16 %v225
    %v246 = vpack.c.b16 %v239, %v238
    %v247 = vpack.c.b16 %v241, %v240
    %v248 = vpack.c.b16 %v243, %v242
    %v249 = vpack.c.b16 %v245, %v244
    %v255 = vsel %vm144, %v217, 0
    %257 = vmatpush.bf16.msra.mxu0 0
    %258 = vmatpush.bf16.msra.mxu0 0
    %259 = vmatpush.bf16.msra.mxu0 0
    %260 = vmatpush.bf16.msra.mxu0 0
    %261 = vmatpush.bf16.msra.mxu0 %v249
    %262 = vmatpush.bf16.msra.mxu0 %v248
    %263 = vmatpush.bf16.msra.mxu0 %v247
    %264 = vmatpush.bf16.msra.mxu0 %v246
    %265 = vmatmul.bf16.gmra.mxu0 %v255
    %v266 = vpop.f32.mrf.mxu0
    %v267 = vadd.f32 %v228, %v266
    %v268 = vpop.f32.mrf.mxu0
    %269 = vdwg.mxu0
    %270 = vst.msk [vmem:[#allocation8] sm:$0xff] %vm89, %v267
    // Predicated region
    $region46: #{tpu_custom_call.1} parent=1 // pred_check
      _
    $region47: #{tpu_custom_call.1} parent=1 // pred_check_branch
      %272 = sbr.rel (0) target = $region49
    $region48: #{tpu_custom_call.1} parent=1 // pred_region
      %274 = vsyncadd [#allocation4], 0
      %s276 = sshll.u32 [#allocation7], 4
      %s277 = int_to_ptr.vmem [resolvable:$true] %s276
      %s278 = sshll.u32 %s9, 4
      %s279 = int_to_ptr.hbm [resolvable:$true] %s278
      %281 = dma.vmem_to_hbm [thread:$0]  %s277, 128, %s279, [#allocation4]
    $region49: #{tpu_custom_call.1} parent=1 // pred_fallthru
      _
    // Predicated region
    $region50: #{tpu_custom_call.1} parent=1 // pred_check
      _
    $region51: #{tpu_custom_call.1} parent=1 // pred_check_branch
      %283 = sbr.rel (0) target = $region53
    $region52: #{tpu_custom_call.1} parent=1 // pred_region
      %285 = vsyncadd [#allocation9], 0
      %s287 = sshll.u32 [#allocation8], 4
      %s288 = int_to_ptr.vmem [resolvable:$true] %s287
      %s289 = sshll.u32 %s10, 4
      %s290 = int_to_ptr.hbm [resolvable:$true] %s289
      %292 = dma.vmem_to_hbm [thread:$0]  %s288, 128, %s290, [#allocation9]
    $region53: #{tpu_custom_call.1} parent=1 // pred_fallthru
      _
    // Predicated region
    $region54: #{tpu_custom_call.1} parent=1 // pred_check
      _
    $region55: #{tpu_custom_call.1} parent=1 // pred_check_branch
      %294 = sbr.rel (0) target = $region57
    $region56: #{tpu_custom_call.1} parent=1 // pred_region
      %296 = dma.done [#allocation4], 128
    $region57: #{tpu_custom_call.1} parent=1 // pred_fallthru
      _
    // Predicated region
    $region58: #{tpu_custom_call.1} parent=1 // pred_check
      _
    $region59: #{tpu_custom_call.1} parent=1 // pred_check_branch
      %298 = sbr.rel (0) target = $region61
    $region60: #{tpu_custom_call.1} parent=1 // pred_region
      %300 = dma.done [#allocation9], 128
    $region61: #{tpu_custom_call.1} parent=1 // pred_fallthru
      _
    %301 = vsyncpa [#allocation3], 1
    %302 = vsyncpa [#allocation6], 1
    %303 = vsyncpa [#allocation4], 1
    %304 = vsyncpa [#allocation9], 1

</llo_original>
